<compile_context>
chip_gen: v7x
topology: tpu7x:2x2x1
jax: 0.10.0
libtpu: 0.0.40
codegen_flags: <defaults>
</compile_context>

<pallas_src>
import functools

import jax
import jax.numpy as jnp
import numpy as np
from jax import lax
from jax.experimental import pallas as pl
from jax.experimental.pallas import tpu as pltpu

K = 7           # conv kernel size
PAD = 3         # reflection pad
EPS = 1e-5      # BatchNorm eps (PyTorch default)
LANE = 128      # TPU lane width
VMEM_LIMIT = 32 * 1024 * 1024   # <= scoped/physical VMEM on v5e / v6e / v7x


def _round_up(x, m):
    return (x + m - 1) // m * m


def _conv_stats_kernel(p_ref, w_ref, conv_ref, stats_ref):
    """One row tile of the 7x7 conv as a single MXU matmul + partial BN stats.

    p_ref:     (TILE_M, KP)   bf16 im2col patch tile (KP = 49*Cin padded to 128k)
    w_ref:     (KP, CP)       bf16 weights (constant index_map -> stays resident)
    conv_ref:  (TILE_M, CP)   bf16 conv output tile (CP = 128 -> lane-dense)
    stats_ref: (1, 2, CP)     f32 partials: row 0 = sum, row 1 = sum of squares
    """
    acc = jnp.dot(p_ref[...], w_ref[...], preferred_element_type=jnp.float32)
    conv_ref[...] = acc.astype(conv_ref.dtype)
    s = jnp.sum(acc, axis=0, keepdims=True)            # (1, CP)
    sq = jnp.sum(acc * acc, axis=0, keepdims=True)     # (1, CP)
    stats_ref[0] = jnp.concatenate([s, sq], axis=0)    # (2, CP)


def _bn_relu_kernel(conv_ref, scale_ref, shift_ref, o_ref):
    """Fused affine BatchNorm + ReLU; CP = 128 -> lane-dense load/store."""
    y = conv_ref[...].astype(jnp.float32) * scale_ref[...] + shift_ref[...]
    o_ref[...] = jnp.maximum(y, 0.0).astype(o_ref.dtype)


def inconv_forward(x_nchw, w_oihw, b, gamma, beta, *, tile_m=2048):
    """Full Inconv forward.  Input/output NCHW (PyTorch convention)."""
    N, Cin, H, W = x_nchw.shape
    Cout = w_oihw.shape[0]
    out_dtype = x_nchw.dtype

    # ---- plain-JAX glue: NCHW->NHWC, bf16 cast, reflection pad, im2col ----
    x_nhwc = jnp.transpose(x_nchw, (0, 2, 3, 1)).astype(jnp.bfloat16)
    xp = jnp.pad(x_nhwc, ((0, 0), (PAD, PAD), (PAD, PAD), (0, 0)),
                 mode="reflect")

    M = N * H * W
    KC = K * K * Cin
    KP = _round_up(KC, LANE)      # contraction padded to the native MXU depth
    CP = _round_up(Cout, LANE)    # lane-dense output channels

    # patch columns ordered tap-major then channel: (kh*K + kw)*Cin + c.
    # The lane pad KC->KP is folded into the same concat (no extra XLA pass).
    slabs = [xp[:, kh:kh + H, kw:kw + W, :]
             for kh in range(K) for kw in range(K)]
    if KP != KC:
        slabs.append(jnp.zeros((N, H, W, KP - KC), jnp.bfloat16))
    patches = jnp.concatenate(slabs, axis=-1)           # (N, H, W, KP) bf16
    p2d = patches.reshape(M, KP)

    # tile_m: big blocks amortize the ~0.35us/grid-step overhead, but keep
    # >= 8 grid steps when the problem allows (v7x has 2 TensorCores; also
    # keeps the input/output double-buffering busy).
    tile_m = max(8, min(int(tile_m), _round_up(M, 8)))
    tile_m = min(tile_m, max(8, _round_up((M + 7) // 8, 8)))
    tile_m = _round_up(tile_m, 8)
    MP = _round_up(M, tile_m)
    n_blocks = MP // tile_m
    if MP != M:   # zero rows contribute exactly zero to the BN partials
        p2d = jnp.pad(p2d, ((0, MP - M), (0, 0)))

    # weights: OIHW -> (kh, kw, Cin, Cout) -> (KC, Cout) -> pad to (KP, CP)
    w2d = jnp.transpose(w_oihw, (2, 3, 1, 0)).reshape(KC, Cout)
    w2d = jnp.pad(w2d, ((0, KP - KC), (0, CP - Cout))).astype(jnp.bfloat16)

    # ---- pass 1: tiled conv matmul (bf16 out) + per-block partial stats ----
    conv2d, part = pl.pallas_call(
        _conv_stats_kernel,
        out_shape=(
            jax.ShapeDtypeStruct((MP, CP), jnp.bfloat16),
            jax.ShapeDtypeStruct((n_blocks, 2, CP), jnp.float32),
        ),
        grid=(n_blocks,),
        in_specs=[
            pl.BlockSpec((tile_m, KP), lambda i: (i, 0)),
            pl.BlockSpec((KP, CP), lambda i: (0, 0)),
        ],
        out_specs=(
            pl.BlockSpec((tile_m, CP), lambda i: (i, 0)),
            pl.BlockSpec((1, 2, CP), lambda i: (i, 0, 0)),
        ),
        compiler_params=pltpu.CompilerParams(
            dimension_semantics=("parallel",),
            vmem_limit_bytes=VMEM_LIMIT),
    )(p2d, w2d)

    # ---- BN statistics (tiny, f32): combine partials, fold bias/gamma/beta
    #      into a single per-channel scale/shift.  The conv bias shifts the
    #      batch mean by exactly the same amount, so it cancels in `shift`;
    #      the explicit fold below is exact and only valid for training-mode
    #      BatchNorm (which is what nn.BatchNorm2d does in this module). ----
    tot = jnp.sum(part, axis=0)                          # (2, CP)
    mean_c = tot[0] / M                                  # mean of bias-free conv
    # NOTE: E[x^2]-mean^2 in f32 can cancel badly if |mean| >> std; acceptable
    # here (conv of normalized activations) and guarded by the max(.,0).
    var = jnp.maximum(tot[1] / M - mean_c * mean_c, 0.0)  # bias-invariant
    inv = lax.rsqrt(var + EPS)
    b_p = jnp.pad(b.astype(jnp.float32), (0, CP - Cout))
    gamma_p = jnp.pad(gamma.astype(jnp.float32), (0, CP - Cout))
    beta_p = jnp.pad(beta.astype(jnp.float32), (0, CP - Cout))
    mean_y = mean_c + b_p                                # batch mean of conv + b
    scale = (gamma_p * inv).reshape(1, CP)
    shift = (beta_p + (b_p - mean_y) * gamma_p * inv).reshape(1, CP)

    # ---- pass 2: scale*x + shift, ReLU; output aliases the conv buffer ----
    out2d = pl.pallas_call(
        _bn_relu_kernel,
        out_shape=jax.ShapeDtypeStruct((MP, CP), jnp.bfloat16),
        grid=(n_blocks,),
        in_specs=[
            pl.BlockSpec((tile_m, CP), lambda i: (i, 0)),
            pl.BlockSpec((1, CP), lambda i: (0, 0)),
            pl.BlockSpec((1, CP), lambda i: (0, 0)),
        ],
        out_specs=pl.BlockSpec((tile_m, CP), lambda i: (i, 0)),
        input_output_aliases={0: 0},
        compiler_params=pltpu.CompilerParams(
            dimension_semantics=("parallel",),
            vmem_limit_bytes=VMEM_LIMIT),
    )(conv2d, scale, shift)

    # slice + NHWC->NCHW + cast back: one fused XLA pass under jit.
    # TODO(synk): drop this pass entirely (keep NHWC) when the consumer allows.
    out_nhwc = out2d[:M, :Cout].reshape(N, H, W, Cout)
    return jnp.transpose(out_nhwc, (0, 3, 1, 2)).astype(out_dtype)


def inconv_reference(x, w, b, gamma, beta):
    """Plain-JAX reference (ReflectionPad + conv + BatchNorm(train) + ReLU)."""
    xp = jnp.pad(x, ((0, 0), (0, 0), (PAD, PAD), (PAD, PAD)), mode="reflect")
    y = lax.conv_general_dilated(
        xp, w, window_strides=(1, 1), padding="VALID",
        dimension_numbers=("NCHW", "OIHW", "NCHW"))
    y = y + b.reshape(1, -1, 1, 1)
    mean = jnp.mean(y, axis=(0, 2, 3), keepdims=True)
    var = jnp.var(y, axis=(0, 2, 3), keepdims=True)
    y = (y - mean) / jnp.sqrt(var + EPS)
    y = y * gamma.reshape(1, -1, 1, 1) + beta.reshape(1, -1, 1, 1)
    return jnp.maximum(y, 0.0)


if __name__ == "__main__":
    # Small shapes consistent with Inconv(in_ch=4, out_ch=8, BatchNorm2d, use_bias=False)
    N, Cin, H, W = 2, 4, 16, 16
    Cout = 8
    use_bias = False   # pix2pix default when norm_layer is BatchNorm2d

    key = jax.random.PRNGKey(0)
    kx, kw, kb = jax.random.split(key, 3)
    x = jax.random.normal(kx, (N, Cin, H, W), dtype=jnp.float32)
    w = jax.random.normal(kw, (Cout, Cin, K, K), dtype=jnp.float32) * 0.1
    b = (jax.random.normal(kb, (Cout,), dtype=jnp.float32) * 0.1
         if use_bias else jnp.zeros((Cout,), dtype=jnp.float32))
    gamma = jnp.ones((Cout,), dtype=jnp.float32)   # BatchNorm2d affine init
    beta = jnp.zeros((Cout,), dtype=jnp.float32)

    # M = 2*16*16 = 512 -> tile_m auto-clamps to 64 -> an 8-step parallel grid.
    fwd = jax.jit(functools.partial(inconv_forward, tile_m=2048))
    out = jax.block_until_ready(fwd(x, w, b, gamma, beta))
    ref = jax.block_until_ready(inconv_reference(x, w, b, gamma, beta))

    # bf16 MXU operands + bf16 intermediate (f32 accumulate / f32 BN math)
    np.testing.assert_allclose(np.asarray(out), np.asarray(ref),
                               rtol=2e-2, atol=2e-2)

    print("KERNEL_OK")
</pallas_src>

<mosaic_0001>
module attributes {stable_mosaic.version = 11 : i64} {
  func.func @_conv_stats_kernel(%arg0: i32, %arg1: memref<64x256xbf16, #tpu.memory_space<vmem>>, %arg2: memref<256x128xbf16, #tpu.memory_space<vmem>>, %arg3: memref<64x128xbf16, #tpu.memory_space<vmem>>, %arg4: memref<1x2x128xf32, #tpu.memory_space<vmem>>) attributes {dimension_semantics = [#tpu.dimension_semantics<parallel>], iteration_bounds = array<i64: 8>, scalar_prefetch = 0 : i64, scratch_operands = 0 : i64, tpu.core_type = #tpu.core_type<tc>, window_params = [{transform_indices = @transform_0, window_bounds = array<i64: 64, 256>}, {pipeline_mode = #tpu.pipeline_mode<synchronous>, transform_indices = @transform_1, window_bounds = array<i64: 256, 128>}, {transform_indices = @transform_2, window_bounds = array<i64: 64, 128>}, {transform_indices = @transform_3, window_bounds = array<i64: 1, 2, 128>}]} {
    %c0 = arith.constant 0 : index
    %c0_0 = arith.constant 0 : index
    %0 = vector.load %arg1[%c0, %c0_0] : memref<64x256xbf16, #tpu.memory_space<vmem>>, vector<64x256xbf16>
    %c0_1 = arith.constant 0 : index
    %c0_2 = arith.constant 0 : index
    %1 = vector.load %arg2[%c0_1, %c0_2] : memref<256x128xbf16, #tpu.memory_space<vmem>>, vector<256x128xbf16>
    %cst = arith.constant dense<0.000000e+00> : vector<64x128xf32>
    %2 = tpu.matmul %0, %1, %cst {dimension_numbers = #tpu.dot_dimension_numbers<[1], [0], [0], [1], [0, 0, 1, 1], [], []>} : vector<64x256xbf16>, vector<256x128xbf16>, vector<64x128xf32> -> vector<64x128xf32>
    %3 = arith.truncf %2 : vector<64x128xf32> to vector<64x128xbf16>
    %c0_3 = arith.constant 0 : index
    %c0_4 = arith.constant 0 : index
    %4 = vector.load %arg3[%c0_3, %c0_4] : memref<64x128xbf16, #tpu.memory_space<vmem>>, vector<64x128xbf16>
    tpu.vector_store %arg3[%c0_3, %c0_4], %3 {strides = array<i32>} : memref<64x128xbf16, #tpu.memory_space<vmem>>, vector<64x128xbf16>,
    %cst_5 = arith.constant dense<0.000000e+00> : vector<128xf32>
    %5 = vector.multi_reduction <add>, %2, %cst_5 [0] : vector<64x128xf32> to vector<128xf32>
    %6 = vector.shape_cast %5 : vector<128xf32> to vector<1x128xf32>
    %7 = arith.mulf %2, %2 : vector<64x128xf32>
    %cst_6 = arith.constant dense<0.000000e+00> : vector<128xf32>
    %8 = vector.multi_reduction <add>, %7, %cst_6 [0] : vector<64x128xf32> to vector<128xf32>
    %9 = vector.shape_cast %8 : vector<128xf32> to vector<1x128xf32>
    %10 = tpu.concatenate %6, %9 in 0 : vector<1x128xf32>, vector<1x128xf32> -> vector<2x128xf32>
    %c0_7 = arith.constant 0 : index
    %c0_8 = arith.constant 0 : index
    %c0_9 = arith.constant 0 : index
    %11 = vector.load %arg4[%c0_7, %c0_8, %c0_9] : memref<1x2x128xf32, #tpu.memory_space<vmem>>, vector<1x2x128xf32>
    %12 = vector.shape_cast %11 : vector<1x2x128xf32> to vector<2x128xf32>
    %13 = vector.shape_cast %10 : vector<2x128xf32> to vector<1x2x128xf32>
    tpu.vector_store %arg4[%c0_7, %c0_8, %c0_9], %13 {strides = array<i32>} : memref<1x2x128xf32, #tpu.memory_space<vmem>>, vector<1x2x128xf32>,
    return
  }
  func.func @transform_0(%arg0: i32) -> (i32, i32) {
    %c0_i32 = arith.constant 0 : i32
    %c0_i32_0 = arith.constant 0 : i32
    return %arg0, %c0_i32 : i32, i32
  }
  func.func @transform_1(%arg0: i32) -> (i32, i32) {
    %c0_i32 = arith.constant 0 : i32
    %c0_i32_0 = arith.constant 0 : i32
    %c0_i32_1 = arith.constant 0 : i32
    return %c0_i32, %c0_i32_0 : i32, i32
  }
  func.func @transform_2(%arg0: i32) -> (i32, i32) {
    %c0_i32 = arith.constant 0 : i32
    %c0_i32_0 = arith.constant 0 : i32
    return %arg0, %c0_i32 : i32, i32
  }
  func.func @transform_3(%arg0: i32) -> (i32, i32, i32) {
    %c0_i32 = arith.constant 0 : i32
    %c0_i32_0 = arith.constant 0 : i32
    %c0_i32_1 = arith.constant 0 : i32
    return %arg0, %c0_i32, %c0_i32_0 : i32, i32, i32
  }
}

module attributes {stable_mosaic.version = 11 : i64} {
  func.func @_bn_relu_kernel(%arg0: i32, %arg1: memref<64x128xbf16, #tpu.memory_space<vmem>>, %arg2: memref<1x128xf32, #tpu.memory_space<vmem>>, %arg3: memref<1x128xf32, #tpu.memory_space<vmem>>, %arg4: memref<64x128xbf16, #tpu.memory_space<vmem>>) attributes {dimension_semantics = [#tpu.dimension_semantics<parallel>], iteration_bounds = array<i64: 8>, scalar_prefetch = 0 : i64, scratch_operands = 0 : i64, tpu.core_type = #tpu.core_type<tc>, window_params = [{transform_indices = @transform_0, window_bounds = array<i64: 64, 128>}, {pipeline_mode = #tpu.pipeline_mode<synchronous>, transform_indices = @transform_1, window_bounds = array<i64: 1, 128>}, {pipeline_mode = #tpu.pipeline_mode<synchronous>, transform_indices = @transform_2, window_bounds = array<i64: 1, 128>}, {transform_indices = @transform_3, window_bounds = array<i64: 64, 128>}]} {
    %c0 = arith.constant 0 : index
    %c0_0 = arith.constant 0 : index
    %0 = vector.load %arg1[%c0, %c0_0] : memref<64x128xbf16, #tpu.memory_space<vmem>>, vector<64x128xbf16>
    %1 = arith.extf %0 : vector<64x128xbf16> to vector<64x128xf32>
    %c0_1 = arith.constant 0 : index
    %c0_2 = arith.constant 0 : index
    %2 = vector.load %arg2[%c0_1, %c0_2] : memref<1x128xf32, #tpu.memory_space<vmem>>, vector<1x128xf32>
    %3 = vector.broadcast %2 : vector<1x128xf32> to vector<64x128xf32>
    %4 = arith.mulf %1, %3 : vector<64x128xf32>
    %c0_3 = arith.constant 0 : index
    %c0_4 = arith.constant 0 : index
    %5 = vector.load %arg3[%c0_3, %c0_4] : memref<1x128xf32, #tpu.memory_space<vmem>>, vector<1x128xf32>
    %6 = vector.broadcast %5 : vector<1x128xf32> to vector<64x128xf32>
    %7 = arith.addf %4, %6 : vector<64x128xf32>
    %cst = arith.constant 0.000000e+00 : f32
    %8 = vector.broadcast %cst : f32 to vector<64x128xf32>
    %9 = arith.maximumf %7, %8 : vector<64x128xf32>
    %10 = arith.truncf %9 : vector<64x128xf32> to vector<64x128xbf16>
    %c0_5 = arith.constant 0 : index
    %c0_6 = arith.constant 0 : index
    %11 = vector.load %arg4[%c0_5, %c0_6] : memref<64x128xbf16, #tpu.memory_space<vmem>>, vector<64x128xbf16>
    tpu.vector_store %arg4[%c0_5, %c0_6], %10 {strides = array<i32>} : memref<64x128xbf16, #tpu.memory_space<vmem>>, vector<64x128xbf16>,
    return
  }
  func.func @transform_0(%arg0: i32) -> (i32, i32) {
    %c0_i32 = arith.constant 0 : i32
    %c0_i32_0 = arith.constant 0 : i32
    return %arg0, %c0_i32 : i32, i32
  }
  func.func @transform_1(%arg0: i32) -> (i32, i32) {
    %c0_i32 = arith.constant 0 : i32
    %c0_i32_0 = arith.constant 0 : i32
    %c0_i32_1 = arith.constant 0 : i32
    return %c0_i32, %c0_i32_0 : i32, i32
  }
  func.func @transform_2(%arg0: i32) -> (i32, i32) {
    %c0_i32 = arith.constant 0 : i32
    %c0_i32_0 = arith.constant 0 : i32
    %c0_i32_1 = arith.constant 0 : i32
    return %c0_i32, %c0_i32_0 : i32, i32
  }
  func.func @transform_3(%arg0: i32) -> (i32, i32) {
    %c0_i32 = arith.constant 0 : i32
    %c0_i32_0 = arith.constant 0 : i32
    return %arg0, %c0_i32 : i32, i32
  }
}

</mosaic_0001>

<llo_original>
// kernel: inconv_forward.3
$region0: #{inconv_forward.3}
  #allocation0 [shape = 'u32[]', space=smem, size = 0x4, offset = 0x4, fixed_abs, tag = 'smem constant byte address 0x4 - core index']
  #allocation1 [shape = 'u32[144,128]{1,0:T(1,128)}', space=vmem, size = 0x12000, scoped, tag = 'internal scratch']
  %s0 = inlined_call_operand.vmem [shape: bf16[512,128], index: 0, kind: input, shape index: {}, may-alias: {0,3}]
  %s1 = inlined_call_operand.vmem [shape: f32[1,128], index: 1, kind: input, shape index: {}]
  %s2 = inlined_call_operand.vmem [shape: f32[1,128], index: 2, kind: input, shape index: {}]
  %s3 = inlined_call_operand.vmem [shape: bf16[512,128], index: 3, kind: output, shape index: {}, may-alias: {0,3}]
  %s4 = sld [smem:[#allocation0]]
  $region45: #{inconv_forward.3} parent=0
    _
  %s6 = ssub.s32 1, %s4
  %s7 = scalar_select 0, %s6, %s4
  loop: start=0, step=1, limit=10
  $region2: #{inconv_forward.3} parent=0 // loop_pre_header
    _
  $region3: #{inconv_forward.3} parent=0 // loop_header
    %s9 = sphi 0, %s13
    %p10 = scmp.ge.s32.totalorder %s9, 10
    %s19 = sphi 0, %s21
    %s22 = sphi 0, %s19
    %s23 = sphi 0, %s22
    %s39 = sphi 0, %s23
    %s43 = sphi 0, %s43
    %s45 = sphi 0, %s43
    %s46 = sphi 0, %s45
    %s60 = sphi 0, %s46
    %s64 = sphi 0, %s64
    %s66 = sphi 0, %s64
    %s67 = sphi 0, %s66
    %s81 = sphi 0, %s67
    %s87 = sphi 0, %s89
    %s90 = sphi 0, %s87
    %s91 = sphi 0, %s90
    %s107 = sphi 0, %s91
  $region4: #{inconv_forward.3} parent=0 // loop_header_branch
    %12 = sbr.rel (%p10) target = $region8
  $region5: #{inconv_forward.3} parent=0 // loop_body
    %s14 = ssub.s32 %s9, 1
    %s15 = ssub.s32 %s9, 2
    %s16 = sadd.s32 %s9, 1
    %s17 = ssub.s32 %s9, %s16
    %p18 = scmp.eq.s32.totalorder %s17, 0
    %s20 = sadd.s32 %s19, 1
    %s21 = scalar_select %p18, %s19, %s20
    %p24 = pneg %p18
    %p25 = scmp.eq.s32.totalorder %s9, 7
    %p26 = por %p24, %p25
    %p27 = scmp.ne.s32.totalorder %s19, %s22
    %p28 = scmp.eq.s32.totalorder %s9, 0
    %p29 = por %p27, %p28
    %p30 = scmp.ne.s32.totalorder %s19, %s22
    %p31 = scmp.eq.s32.totalorder %s14, 7
    %p32 = por %p30, %p31
    %p33 = scmp.ne.s32.totalorder %s22, %s23
    %p34 = scmp.eq.s32.totalorder %s14, 0
    %p35 = por %p33, %p34
    %p36 = scmp.ne.s32.totalorder %s22, %s23
    %p37 = scmp.eq.s32.totalorder %s15, 7
    %p38 = por %p36, %p37
    %p40 = scmp.ne.s32.totalorder %s23, %s39
    %p41 = scmp.eq.s32.totalorder %s15, 0
    %p42 = por %p40, %p41
    %s44 = sadd.s32 %s43, 1
    %p47 = scmp.eq.s32.totalorder %s9, 7
    %p48 = scmp.ne.s32.totalorder %s43, %s45
    %p49 = scmp.eq.s32.totalorder %s9, 0
    %p50 = por %p48, %p49
    %p51 = scmp.ne.s32.totalorder %s43, %s45
    %p52 = scmp.eq.s32.totalorder %s14, 7
    %p53 = por %p51, %p52
    %p54 = scmp.ne.s32.totalorder %s45, %s46
    %p55 = scmp.eq.s32.totalorder %s14, 0
    %p56 = por %p54, %p55
    %p57 = scmp.ne.s32.totalorder %s45, %s46
    %p58 = scmp.eq.s32.totalorder %s15, 7
    %p59 = por %p57, %p58
    %p61 = scmp.ne.s32.totalorder %s46, %s60
    %p62 = scmp.eq.s32.totalorder %s15, 0
    %p63 = por %p61, %p62
    %s65 = sadd.s32 %s64, 1
    %p68 = scmp.eq.s32.totalorder %s9, 7
    %p69 = scmp.ne.s32.totalorder %s64, %s66
    %p70 = scmp.eq.s32.totalorder %s9, 0
    %p71 = por %p69, %p70
    %p72 = scmp.ne.s32.totalorder %s64, %s66
    %p73 = scmp.eq.s32.totalorder %s14, 7
    %p74 = por %p72, %p73
    %p75 = scmp.ne.s32.totalorder %s66, %s67
    %p76 = scmp.eq.s32.totalorder %s14, 0
    %p77 = por %p75, %p76
    %p78 = scmp.ne.s32.totalorder %s66, %s67
    %p79 = scmp.eq.s32.totalorder %s15, 7
    %p80 = por %p78, %p79
    %p82 = scmp.ne.s32.totalorder %s67, %s81
    %p83 = scmp.eq.s32.totalorder %s15, 0
    %p84 = por %p82, %p83
    %s85 = ssub.s32 %s9, %s16
    %p86 = scmp.eq.s32.totalorder %s85, 0
    %s88 = sadd.s32 %s87, 1
    %s89 = scalar_select %p86, %s87, %s88
    %p92 = pneg %p86
    %p93 = scmp.eq.s32.totalorder %s9, 7
    %p94 = por %p92, %p93
    %p95 = scmp.ne.s32.totalorder %s87, %s90
    %p96 = scmp.eq.s32.totalorder %s9, 0
    %p97 = por %p95, %p96
    %p98 = scmp.ne.s32.totalorder %s87, %s90
    %p99 = scmp.eq.s32.totalorder %s14, 7
    %p100 = por %p98, %p99
    %p101 = scmp.ne.s32.totalorder %s90, %s91
    %p102 = scmp.eq.s32.totalorder %s14, 0
    %p103 = por %p101, %p102
    %p104 = scmp.ne.s32.totalorder %s90, %s91
    %p105 = scmp.eq.s32.totalorder %s15, 7
    %p106 = por %p104, %p105
    %p108 = scmp.ne.s32.totalorder %s91, %s107
    %p109 = scmp.eq.s32.totalorder %s15, 0
    %p110 = por %p108, %p109
    %p111 = scmp.le.s32.totalorder 1, %s9
    %p112 = scmp.lt.s32.totalorder %s9, 9
    %p113 = pnand %p111, %p112
    %p114 = pneg %p113
    // Predicated region
    $region9: #{inconv_forward.3} parent=5 // pred_check
      _
    $region10: #{inconv_forward.3} parent=5 // pred_check_branch
      %116 = sbr.rel (%p113) target = $region12
    $region11: #{inconv_forward.3} parent=5 // pred_region
      %s117 = ssub.s32 %s9, 1
      // Predicated region
      $region13: #{inconv_forward.3} parent=11 // pred_check
        %p118 = pneg %p56
      $region14: #{inconv_forward.3} parent=11 // pred_check_branch
        %120 = sbr.rel (%p118) target = $region16
      $region15: #{inconv_forward.3} parent=11 // pred_region
        _
      $region16: #{inconv_forward.3} parent=11 // pred_fallthru
        _
      // Predicated region
      $region17: #{inconv_forward.3} parent=11 // pred_check
        %p121 = pneg %p77
      $region18: #{inconv_forward.3} parent=11 // pred_check_branch
        %123 = sbr.rel (%p121) target = $region20
      $region19: #{inconv_forward.3} parent=11 // pred_region
        _
      $region20: #{inconv_forward.3} parent=11 // pred_fallthru
        _
    $region12: #{inconv_forward.3} parent=5 // pred_fallthru
      _
    %p124 = scmp.lt.s32.totalorder %s9, 8
    // Predicated region
    $region21: #{inconv_forward.3} parent=5 // pred_check
      %p125 = pneg %p124
    $region22: #{inconv_forward.3} parent=5 // pred_check_branch
      %127 = sbr.rel (%p125) target = $region24
    $region23: #{inconv_forward.3} parent=5 // pred_region
      // Predicated region
      $region25: #{inconv_forward.3} parent=23 // pred_check
        %p128 = pneg %p29
      $region26: #{inconv_forward.3} parent=23 // pred_check_branch
        %130 = sbr.rel (%p128) target = $region28
      $region27: #{inconv_forward.3} parent=23 // pred_region
        %s131 = smul.u32 8, %s9
        %p132 = scmp.lt.s32.totalorder %s131, 63
        %s133 = scalar_select %p132, %s131, 63
        %s134 = smul.addr %s133, 4
        %s135 = scalar_lea.vmem %s0, %s134
        %s136 = smul.u32 8, %s9
      $region28: #{inconv_forward.3} parent=23 // pred_fallthru
        _
    $region24: #{inconv_forward.3} parent=5 // pred_fallthru
      _
    %p137 = scmp.le.s32.totalorder 1, %s9
    %p138 = scmp.lt.s32.totalorder %s9, 9
    %p139 = pnand %p137, %p138
    %p140 = pneg %p139
    // Predicated region
    $region29: #{inconv_forward.3} parent=5 // pred_check
      _
    $region30: #{inconv_forward.3} parent=5 // pred_check_branch
      %142 = sbr.rel (%p139) target = $region32
    $region31: #{inconv_forward.3} parent=5 // pred_region
      %s143 = ssub.s32 %s9, 1
      %s144 = smul.u32 8, %s14
      %p145 = scmp.lt.s32.totalorder %s144, 63
      %s146 = scalar_select %p145, %s144, 63
      %s147 = smul.addr %s146, 4
      %s148 = scalar_lea.vmem %s0, %s147
      %p149 = pneg %p35
      %p150 = pneg %p32
      %p151 = pneg %p56
      %p152 = pneg %p53
      %p153 = pneg %p77
      %p154 = pneg %p74
      %p155 = pneg %p103
      %p156 = pneg %p100
      %s157 = smul.u32 8, %s14
      %p158 = scmp.lt.s32.totalorder %s157, 63
      %s159 = scalar_select %p158, %s157, 63
      %s160 = smul.addr %s159, 4
      %s161 = scalar_lea.vmem %s3, %s160
      %s162 = smul.u32 8, %s14
      %p163 = scmp.lt.s32.totalorder %s162, 63
      %s164 = scalar_select %p163, %s162, 63
      %s165 = smul.addr %s164, 4
      %s166 = scalar_lea.vmem %s0, %s165
      %s167 = smul.u32 8, %s14
      %s168 = smul.u32 8, %s14
      %p169 = scmp.lt.s32.totalorder %s168, 63
      %s170 = scalar_select %p169, %s168, 63
      %s171 = smul.addr %s170, 4
      %s172 = scalar_lea.vmem %s3, %s171
      %s173 = smul.u32 8, %s14
      %v174 = vld [vmem:[%s166] sm:$0xf]
      %v175 = vld [vmem:[%s166 + $0x4] sm:$0xf]
      %v176 = vld [vmem:[%s166 + $0x8] sm:$0xf]
      %v177 = vld [vmem:[%s166 + $0xc] sm:$0xf]
      %v178 = vld [vmem:[%s166 + $0x10] sm:$0xf]
      %v179 = vld [vmem:[%s166 + $0x14] sm:$0xf]
      %v180 = vld [vmem:[%s166 + $0x18] sm:$0xf]
      %v181 = vld [vmem:[%s166 + $0x1c] sm:$0xf]
      %v182 = vunpack.c.l.bf16 %v174
      %v183 = vunpack.c.l.bf16 %v175
      %v184 = vunpack.c.l.bf16 %v176
      %v185 = vunpack.c.l.bf16 %v177
      %v186 = vunpack.c.l.bf16 %v178
      %v187 = vunpack.c.l.bf16 %v179
      %v188 = vunpack.c.l.bf16 %v180
      %v189 = vunpack.c.l.bf16 %v181
      %v190 = vld [vmem:[%s1] sm:$0x1]
      %v192 = vlaneseq
      %v193 = vshrl.u32 %v192, 7
      %v194 = vsub.s32 0, %v193
      %v195 = vrot.slane %v190, %v194
      %v197 = vmul.f32 %v182, %v195
      %v198 = vmul.f32 %v183, %v195
      %v199 = vmul.f32 %v184, %v195
      %v200 = vmul.f32 %v185, %v195
      %v201 = vmul.f32 %v186, %v195
      %v202 = vmul.f32 %v187, %v195
      %v203 = vmul.f32 %v188, %v195
      %v204 = vmul.f32 %v189, %v195
      %v205 = vld [vmem:[%s2] sm:$0x1]
      %v207 = vlaneseq
      %v208 = vshrl.u32 %v207, 7
      %v209 = vsub.s32 0, %v208
      %v210 = vrot.slane %v205, %v209
      %v212 = vadd.f32 %v197, %v210
      %v213 = vadd.f32 %v198, %v210
      %v214 = vadd.f32 %v199, %v210
      %v215 = vadd.f32 %v200, %v210
      %v216 = vadd.f32 %v201, %v210
      %v217 = vadd.f32 %v202, %v210
      %v218 = vadd.f32 %v203, %v210
      %v219 = vadd.f32 %v204, %v210
      %v220 = vmax.f32 %v212, 0.0
      %v221 = vmax.f32 %v213, 0.0
      %v222 = vmax.f32 %v214, 0.0
      %v223 = vmax.f32 %v215, 0.0
      %v224 = vmax.f32 %v216, 0.0
      %v225 = vmax.f32 %v217, 0.0
      %v226 = vmax.f32 %v218, 0.0
      %v227 = vmax.f32 %v219, 0.0
      %v228 = vpack.c.bf16 %v221, %v220
      %v229 = vpack.c.bf16 %v223, %v222
      %v230 = vpack.c.bf16 %v225, %v224
      %v231 = vpack.c.bf16 %v227, %v226
      %v236 = vunpack.c.l.b16 %v228
      %v237 = vunpack.c.h.b16 %v228
      %v238 = vunpack.c.l.b16 %v229
      %v239 = vunpack.c.h.b16 %v229
      %v240 = vunpack.c.l.b16 %v230
      %v241 = vunpack.c.h.b16 %v230
      %v242 = vunpack.c.l.b16 %v231
      %v243 = vunpack.c.h.b16 %v231
      %v244 = vpack.c.b16 %v236, %v236
      %v245 = vpack.c.b16 %v237, %v237
      %v246 = vpack.c.b16 %v238, %v238
      %v247 = vpack.c.b16 %v239, %v239
      %v248 = vpack.c.b16 %v240, %v240
      %v249 = vpack.c.b16 %v241, %v241
      %v250 = vpack.c.b16 %v242, %v242
      %v251 = vpack.c.b16 %v243, %v243
      %260 = vst [vmem:[%s172] sm:$0xf] %v244
      %261 = vst [vmem:[%s172 + $0x4] sm:$0xf] %v245
      %262 = vst [vmem:[%s172 + $0x8] sm:$0xf] %v246
      %263 = vst [vmem:[%s172 + $0xc] sm:$0xf] %v247
      %264 = vst [vmem:[%s172 + $0x10] sm:$0xf] %v248
      %265 = vst [vmem:[%s172 + $0x14] sm:$0xf] %v249
      %266 = vst [vmem:[%s172 + $0x18] sm:$0xf] %v250
      %267 = vst [vmem:[%s172 + $0x1c] sm:$0xf] %v251
      %s268 = smul.u32 8, %s14
      %p269 = scmp.lt.s32.totalorder %s268, 63
      %s270 = scalar_select %p269, %s268, 63
      %s271 = smul.addr %s270, 4
      %s272 = scalar_lea.vmem %s3, %s271
      // Predicated region
      $region33: #{inconv_forward.3} parent=31 // pred_check
        %p273 = pneg %p100
      $region34: #{inconv_forward.3} parent=31 // pred_check_branch
        %275 = sbr.rel (%p273) target = $region36
      $region35: #{inconv_forward.3} parent=31 // pred_region
        %s276 = smul.u32 8, %s14
      $region36: #{inconv_forward.3} parent=31 // pred_fallthru
        _
    $region32: #{inconv_forward.3} parent=5 // pred_fallthru
      _
    %p277 = scmp.le.s32.totalorder 2, %s9
    // Predicated region
    $region37: #{inconv_forward.3} parent=5 // pred_check
      %p278 = pneg %p277
    $region38: #{inconv_forward.3} parent=5 // pred_check_branch
      %280 = sbr.rel (%p278) target = $region40
    $region39: #{inconv_forward.3} parent=5 // pred_region
      %s281 = ssub.s32 %s9, 2
      // Predicated region
      $region41: #{inconv_forward.3} parent=39 // pred_check
        %p282 = pneg %p106
      $region42: #{inconv_forward.3} parent=39 // pred_check_branch
        %284 = sbr.rel (%p282) target = $region44
      $region43: #{inconv_forward.3} parent=39 // pred_region
        %s285 = smul.u32 8, %s15
        %p286 = scmp.lt.s32.totalorder %s285, 63
        %s287 = scalar_select %p286, %s285, 63
        %s288 = smul.addr %s287, 4
        %s289 = scalar_lea.vmem %s3, %s288
      $region44: #{inconv_forward.3} parent=39 // pred_fallthru
        _
    $region40: #{inconv_forward.3} parent=5 // pred_fallthru
      _
  $region6: #{inconv_forward.3} parent=0 // loop_footer
    %s13 = sadd.s32 1, %s9
  $region7: #{inconv_forward.3} parent=0 // loop_footer_branch
    %8 = sbr.rel target = $region3
  $region8: #{inconv_forward.3} parent=0 // loop_exit
    _

// kernel: inconv_forward.2
$region0: #{inconv_forward.2}
  #allocation0 [shape = 'u32[]', space=smem, size = 0x4, offset = 0x4, fixed_abs, tag = 'smem constant byte address 0x4 - core index']
  #allocation1 [shape = 'u32[144,128]{1,0:T(1,128)}', space=vmem, size = 0x12000, scoped, tag = 'internal scratch']
  %s0 = inlined_call_operand.vmem [shape: bf16[512,256], index: 0, kind: input, shape index: {}]
  %s1 = inlined_call_operand.vmem [shape: bf16[256,128], index: 1, kind: input, shape index: {}]
  %s2 = inlined_call_operand.vmem [shape: bf16[512,128], index: 2, kind: output, shape index: {0}]
  %s3 = inlined_call_operand.vmem [shape: f32[8,2,128], index: 3, kind: output, shape index: {1}]
  %4 = xla_tuple %s2, %s3
  %s5 = sld [smem:[#allocation0]]
  $region49: #{inconv_forward.2} parent=0
    _
  %s7 = ssub.s32 1, %s5
  %s8 = scalar_select 0, %s7, %s5
  loop: start=0, step=1, limit=10
  $region2: #{inconv_forward.2} parent=0 // loop_pre_header
    _
  $region3: #{inconv_forward.2} parent=0 // loop_header
    %s10 = sphi 0, %s14
    %p11 = scmp.ge.s32.totalorder %s10, 10
    %s20 = sphi 0, %s22
    %s23 = sphi 0, %s20
    %s24 = sphi 0, %s23
    %s40 = sphi 0, %s24
    %s44 = sphi 0, %s44
    %s46 = sphi 0, %s44
    %s47 = sphi 0, %s46
    %s61 = sphi 0, %s47
    %s67 = sphi 0, %s69
    %s70 = sphi 0, %s67
    %s71 = sphi 0, %s70
    %s87 = sphi 0, %s71
    %s93 = sphi 0, %s95
    %s96 = sphi 0, %s93
    %s97 = sphi 0, %s96
    %s113 = sphi 0, %s97
  $region4: #{inconv_forward.2} parent=0 // loop_header_branch
    %13 = sbr.rel (%p11) target = $region8
  $region5: #{inconv_forward.2} parent=0 // loop_body
    %s15 = ssub.s32 %s10, 1
    %s16 = ssub.s32 %s10, 2
    %s17 = sadd.s32 %s10, 1
    %s18 = ssub.s32 %s10, %s17
    %p19 = scmp.eq.s32.totalorder %s18, 0
    %s21 = sadd.s32 %s20, 1
    %s22 = scalar_select %p19, %s20, %s21
    %p25 = pneg %p19
    %p26 = scmp.eq.s32.totalorder %s10, 7
    %p27 = por %p25, %p26
    %p28 = scmp.ne.s32.totalorder %s20, %s23
    %p29 = scmp.eq.s32.totalorder %s10, 0
    %p30 = por %p28, %p29
    %p31 = scmp.ne.s32.totalorder %s20, %s23
    %p32 = scmp.eq.s32.totalorder %s15, 7
    %p33 = por %p31, %p32
    %p34 = scmp.ne.s32.totalorder %s23, %s24
    %p35 = scmp.eq.s32.totalorder %s15, 0
    %p36 = por %p34, %p35
    %p37 = scmp.ne.s32.totalorder %s23, %s24
    %p38 = scmp.eq.s32.totalorder %s16, 7
    %p39 = por %p37, %p38
    %p41 = scmp.ne.s32.totalorder %s24, %s40
    %p42 = scmp.eq.s32.totalorder %s16, 0
    %p43 = por %p41, %p42
    %s45 = sadd.s32 %s44, 1
    %p48 = scmp.eq.s32.totalorder %s10, 7
    %p49 = scmp.ne.s32.totalorder %s44, %s46
    %p50 = scmp.eq.s32.totalorder %s10, 0
    %p51 = por %p49, %p50
    %p52 = scmp.ne.s32.totalorder %s44, %s46
    %p53 = scmp.eq.s32.totalorder %s15, 7
    %p54 = por %p52, %p53
    %p55 = scmp.ne.s32.totalorder %s46, %s47
    %p56 = scmp.eq.s32.totalorder %s15, 0
    %p57 = por %p55, %p56
    %p58 = scmp.ne.s32.totalorder %s46, %s47
    %p59 = scmp.eq.s32.totalorder %s16, 7
    %p60 = por %p58, %p59
    %p62 = scmp.ne.s32.totalorder %s47, %s61
    %p63 = scmp.eq.s32.totalorder %s16, 0
    %p64 = por %p62, %p63
    %s65 = ssub.s32 %s10, %s17
    %p66 = scmp.eq.s32.totalorder %s65, 0
    %s68 = sadd.s32 %s67, 1
    %s69 = scalar_select %p66, %s67, %s68
    %p72 = pneg %p66
    %p73 = scmp.eq.s32.totalorder %s10, 7
    %p74 = por %p72, %p73
    %p75 = scmp.ne.s32.totalorder %s67, %s70
    %p76 = scmp.eq.s32.totalorder %s10, 0
    %p77 = por %p75, %p76
    %p78 = scmp.ne.s32.totalorder %s67, %s70
    %p79 = scmp.eq.s32.totalorder %s15, 7
    %p80 = por %p78, %p79
    %p81 = scmp.ne.s32.totalorder %s70, %s71
    %p82 = scmp.eq.s32.totalorder %s15, 0
    %p83 = por %p81, %p82
    %p84 = scmp.ne.s32.totalorder %s70, %s71
    %p85 = scmp.eq.s32.totalorder %s16, 7
    %p86 = por %p84, %p85
    %p88 = scmp.ne.s32.totalorder %s71, %s87
    %p89 = scmp.eq.s32.totalorder %s16, 0
    %p90 = por %p88, %p89
    %s91 = ssub.s32 %s10, %s17
    %p92 = scmp.eq.s32.totalorder %s91, 0
    %s94 = sadd.s32 %s93, 1
    %s95 = scalar_select %p92, %s93, %s94
    %p98 = pneg %p92
    %p99 = scmp.eq.s32.totalorder %s10, 7
    %p100 = por %p98, %p99
    %p101 = scmp.ne.s32.totalorder %s93, %s96
    %p102 = scmp.eq.s32.totalorder %s10, 0
    %p103 = por %p101, %p102
    %p104 = scmp.ne.s32.totalorder %s93, %s96
    %p105 = scmp.eq.s32.totalorder %s15, 7
    %p106 = por %p104, %p105
    %p107 = scmp.ne.s32.totalorder %s96, %s97
    %p108 = scmp.eq.s32.totalorder %s15, 0
    %p109 = por %p107, %p108
    %p110 = scmp.ne.s32.totalorder %s96, %s97
    %p111 = scmp.eq.s32.totalorder %s16, 7
    %p112 = por %p110, %p111
    %p114 = scmp.ne.s32.totalorder %s97, %s113
    %p115 = scmp.eq.s32.totalorder %s16, 0
    %p116 = por %p114, %p115
    %p117 = scmp.le.s32.totalorder 1, %s10
    %p118 = scmp.lt.s32.totalorder %s10, 9
    %p119 = pnand %p117, %p118
    %p120 = pneg %p119
    // Predicated region
    $region9: #{inconv_forward.2} parent=5 // pred_check
      _
    $region10: #{inconv_forward.2} parent=5 // pred_check_branch
      %122 = sbr.rel (%p119) target = $region12
    $region11: #{inconv_forward.2} parent=5 // pred_region
      %s123 = ssub.s32 %s10, 1
      // Predicated region
      $region13: #{inconv_forward.2} parent=11 // pred_check
        %p124 = pneg %p57
      $region14: #{inconv_forward.2} parent=11 // pred_check_branch
        %126 = sbr.rel (%p124) target = $region16
      $region15: #{inconv_forward.2} parent=11 // pred_region
        _
      $region16: #{inconv_forward.2} parent=11 // pred_fallthru
        _
    $region12: #{inconv_forward.2} parent=5 // pred_fallthru
      _
    %p127 = scmp.lt.s32.totalorder %s10, 8
    // Predicated region
    $region17: #{inconv_forward.2} parent=5 // pred_check
      %p128 = pneg %p127
    $region18: #{inconv_forward.2} parent=5 // pred_check_branch
      %130 = sbr.rel (%p128) target = $region20
    $region19: #{inconv_forward.2} parent=5 // pred_region
      // Predicated region
      $region21: #{inconv_forward.2} parent=19 // pred_check
        %p131 = pneg %p30
      $region22: #{inconv_forward.2} parent=19 // pred_check_branch
        %133 = sbr.rel (%p131) target = $region24
      $region23: #{inconv_forward.2} parent=19 // pred_region
        %s134 = smul.u32 8, %s10
        %p135 = scmp.lt.s32.totalorder %s134, 63
        %s136 = scalar_select %p135, %s134, 63
        %s137 = smul.addr %s136, 2
        %s138 = smul.addr %s137, 4
        %s139 = scalar_lea.vmem %s0, %s138
        %s140 = smul.u32 8, %s10
      $region24: #{inconv_forward.2} parent=19 // pred_fallthru
        _
    $region20: #{inconv_forward.2} parent=5 // pred_fallthru
      _
    %p141 = scmp.le.s32.totalorder 1, %s10
    %p142 = scmp.lt.s32.totalorder %s10, 9
    %p143 = pnand %p141, %p142
    %p144 = pneg %p143
    // Predicated region
    $region25: #{inconv_forward.2} parent=5 // pred_check
      _
    $region26: #{inconv_forward.2} parent=5 // pred_check_branch
      %146 = sbr.rel (%p143) target = $region28
    $region27: #{inconv_forward.2} parent=5 // pred_region
      %s147 = ssub.s32 %s10, 1
      %s148 = smul.u32 8, %s15
      %p149 = scmp.lt.s32.totalorder %s148, 63
      %s150 = scalar_select %p149, %s148, 63
      %s151 = smul.addr %s150, 2
      %s152 = smul.addr %s151, 4
      %s153 = scalar_lea.vmem %s0, %s152
      %p154 = pneg %p36
      %p155 = pneg %p33
      %p156 = pneg %p57
      %p157 = pneg %p54
      %p158 = pneg %p83
      %p159 = pneg %p80
      %s160 = smul.u32 8, %s15
      %p161 = scmp.lt.s32.totalorder %s160, 63
      %s162 = scalar_select %p161, %s160, 63
      %s163 = smul.addr %s162, 4
      %s164 = scalar_lea.vmem %s2, %s163
      %p165 = pneg %p109
      %p166 = pneg %p106
      %p167 = scmp.lt.s32.totalorder %s15, 7
      %s168 = scalar_select %p167, %s15, 7
      %s169 = smul.addr %s168, 2
      %s170 = scalar_lea.vmem %s3, %s169
      %s171 = smul.u32 8, %s15
      %p172 = scmp.lt.s32.totalorder %s171, 63
      %s173 = scalar_select %p172, %s171, 63
      %s174 = smul.addr %s173, 2
      %s175 = smul.addr %s174, 4
      %s176 = scalar_lea.vmem %s0, %s175
      %s177 = smul.u32 8, %s15
      %s178 = smul.u32 8, %s15
      %p179 = scmp.lt.s32.totalorder %s178, 63
      %s180 = scalar_select %p179, %s178, 63
      %s181 = smul.addr %s180, 4
      %s182 = scalar_lea.vmem %s2, %s181
      %s183 = smul.u32 8, %s15
      %p184 = scmp.lt.s32.totalorder %s15, 7
      %s185 = scalar_select %p184, %s15, 7
      %s186 = smul.addr %s185, 2
      %s187 = scalar_lea.vmem %s3, %s186
      %v189 = vld [vmem:[%s176] sm:$0xff]
      %v190 = vld [vmem:[%s176 + $0x8] sm:$0xff]
      %v191 = vld [vmem:[%s176 + $0x10] sm:$0xff]
      %v192 = vld [vmem:[%s176 + $0x18] sm:$0xff]
      %v193 = vld [vmem:[%s176 + $0x20] sm:$0xff]
      %v194 = vld [vmem:[%s176 + $0x28] sm:$0xff]
      %v195 = vld [vmem:[%s176 + $0x30] sm:$0xff]
      %v196 = vld [vmem:[%s176 + $0x38] sm:$0xff]
      %v197 = vld [vmem:[%s1] sm:$0xf]
      %v198 = vld [vmem:[%s1 + $0x4] sm:$0xf]
      %v199 = vld [vmem:[%s1 + $0x8] sm:$0xf]
      %v200 = vld [vmem:[%s1 + $0xc] sm:$0xf]
      %v201 = vld [vmem:[%s1 + $0x10] sm:$0xf]
      %v202 = vld [vmem:[%s1 + $0x14] sm:$0xf]
      %v203 = vld [vmem:[%s1 + $0x18] sm:$0xf]
      %v204 = vld [vmem:[%s1 + $0x1c] sm:$0xf]
      %v205 = vld [vmem:[%s1 + $0x20] sm:$0xf]
      %v206 = vld [vmem:[%s1 + $0x24] sm:$0xf]
      %v207 = vld [vmem:[%s1 + $0x28] sm:$0xf]
      %v208 = vld [vmem:[%s1 + $0x2c] sm:$0xf]
      %v209 = vld [vmem:[%s1 + $0x30] sm:$0xf]
      %v210 = vld [vmem:[%s1 + $0x34] sm:$0xf]
      %v211 = vld [vmem:[%s1 + $0x38] sm:$0xf]
      %v212 = vld [vmem:[%s1 + $0x3c] sm:$0xf]
      %v213 = vld [vmem:[%s1 + $0x40] sm:$0xf]
      %v214 = vld [vmem:[%s1 + $0x44] sm:$0xf]
      %v215 = vld [vmem:[%s1 + $0x48] sm:$0xf]
      %v216 = vld [vmem:[%s1 + $0x4c] sm:$0xf]
      %v217 = vld [vmem:[%s1 + $0x50] sm:$0xf]
      %v218 = vld [vmem:[%s1 + $0x54] sm:$0xf]
      %v219 = vld [vmem:[%s1 + $0x58] sm:$0xf]
      %v220 = vld [vmem:[%s1 + $0x5c] sm:$0xf]
      %v221 = vld [vmem:[%s1 + $0x60] sm:$0xf]
      %v222 = vld [vmem:[%s1 + $0x64] sm:$0xf]
      %v223 = vld [vmem:[%s1 + $0x68] sm:$0xf]
      %v224 = vld [vmem:[%s1 + $0x6c] sm:$0xf]
      %v225 = vld [vmem:[%s1 + $0x70] sm:$0xf]
      %v226 = vld [vmem:[%s1 + $0x74] sm:$0xf]
      %v227 = vld [vmem:[%s1 + $0x78] sm:$0xf]
      %v228 = vld [vmem:[%s1 + $0x7c] sm:$0xf]
      %v237 = vunpack.c.l.b16 %v189
      %v238 = vunpack.c.h.b16 %v189
      %v239 = vunpack.c.l.b16 %v190
      %v240 = vunpack.c.h.b16 %v190
      %v241 = vunpack.c.l.b16 %v191
      %v242 = vunpack.c.h.b16 %v191
      %v243 = vunpack.c.l.b16 %v192
      %v244 = vunpack.c.h.b16 %v192
      %v245 = vunpack.c.l.b16 %v193
      %v246 = vunpack.c.h.b16 %v193
      %v247 = vunpack.c.l.b16 %v194
      %v248 = vunpack.c.h.b16 %v194
      %v249 = vunpack.c.l.b16 %v195
      %v250 = vunpack.c.h.b16 %v195
      %v251 = vunpack.c.l.b16 %v196
      %v252 = vunpack.c.h.b16 %v196
      %v253 = vpack.c.b16 %v239, %v237
      %v254 = vpack.c.b16 %v240, %v238
      %v255 = vpack.c.b16 %v243, %v241
      %v256 = vpack.c.b16 %v244, %v242
      %v257 = vpack.c.b16 %v247, %v245
      %v258 = vpack.c.b16 %v248, %v246
      %v259 = vpack.c.b16 %v251, %v249
      %v260 = vpack.c.b16 %v252, %v250
      %v301 = vunpack.c.l.b16 %v197
      %v302 = vunpack.c.l.b16 %v198
      %v303 = vunpack.c.l.b16 %v199
      %v304 = vunpack.c.l.b16 %v200
      %v305 = vunpack.c.l.b16 %v201
      %v306 = vunpack.c.l.b16 %v202
      %v307 = vunpack.c.l.b16 %v203
      %v308 = vunpack.c.l.b16 %v204
      %v309 = vunpack.c.l.b16 %v205
      %v310 = vunpack.c.l.b16 %v206
      %v311 = vunpack.c.l.b16 %v207
      %v312 = vunpack.c.l.b16 %v208
      %v313 = vunpack.c.l.b16 %v209
      %v314 = vunpack.c.l.b16 %v210
      %v315 = vunpack.c.l.b16 %v211
      %v316 = vunpack.c.l.b16 %v212
      %v317 = vunpack.c.l.b16 %v213
      %v318 = vunpack.c.l.b16 %v214
      %v319 = vunpack.c.l.b16 %v215
      %v320 = vunpack.c.l.b16 %v216
      %v321 = vunpack.c.l.b16 %v217
      %v322 = vunpack.c.l.b16 %v218
      %v323 = vunpack.c.l.b16 %v219
      %v324 = vunpack.c.l.b16 %v220
      %v325 = vunpack.c.l.b16 %v221
      %v326 = vunpack.c.l.b16 %v222
      %v327 = vunpack.c.l.b16 %v223
      %v328 = vunpack.c.l.b16 %v224
      %v329 = vunpack.c.l.b16 %v225
      %v330 = vunpack.c.l.b16 %v226
      %v331 = vunpack.c.l.b16 %v227
      %v332 = vunpack.c.l.b16 %v228
      %v333 = vpack.c.b16 %v302, %v301
      %v334 = vpack.c.b16 %v304, %v303
      %v335 = vpack.c.b16 %v306, %v305
      %v336 = vpack.c.b16 %v308, %v307
      %v337 = vpack.c.b16 %v310, %v309
      %v338 = vpack.c.b16 %v312, %v311
      %v339 = vpack.c.b16 %v314, %v313
      %v340 = vpack.c.b16 %v316, %v315
      %v341 = vpack.c.b16 %v318, %v317
      %v342 = vpack.c.b16 %v320, %v319
      %v343 = vpack.c.b16 %v322, %v321
      %v344 = vpack.c.b16 %v324, %v323
      %v345 = vpack.c.b16 %v326, %v325
      %v346 = vpack.c.b16 %v328, %v327
      %v347 = vpack.c.b16 %v330, %v329
      %v348 = vpack.c.b16 %v332, %v331
      %365 = vmatprep.subr.bf16.mxu0 0
      %366 = vmatpush1.bf16.msra.mxu0 %v333
      %367 = vmatprep.subr.bf16.mxu0 0
      %368 = vmatpush1.bf16.msra.mxu0 %v334
      %369 = vmatprep.subr.bf16.mxu0 0
      %370 = vmatpush1.bf16.msra.mxu0 %v335
      %371 = vmatprep.subr.bf16.mxu0 0
      %372 = vmatpush1.bf16.msra.mxu0 %v336
      %373 = vmatprep.subr.bf16.mxu0 0
      %374 = vmatpush1.bf16.msra.mxu0 %v337
      %375 = vmatprep.subr.bf16.mxu0 0
      %376 = vmatpush1.bf16.msra.mxu0 %v338
      %377 = vmatprep.subr.bf16.mxu0 0
      %378 = vmatpush1.bf16.msra.mxu0 %v339
      %379 = vmatprep.subr.bf16.mxu0 0
      %380 = vmatpush1.bf16.msra.mxu0 %v340
      %381 = vmatprep.subr.bf16.mxu0 0
      %382 = vmatpush1.bf16.msra.mxu0 %v341
      %383 = vmatprep.subr.bf16.mxu0 0
      %384 = vmatpush1.bf16.msra.mxu0 %v342
      %385 = vmatprep.subr.bf16.mxu0 0
      %386 = vmatpush1.bf16.msra.mxu0 %v343
      %387 = vmatprep.subr.bf16.mxu0 0
      %388 = vmatpush1.bf16.msra.mxu0 %v344
      %389 = vmatprep.subr.bf16.mxu0 0
      %390 = vmatpush1.bf16.msra.mxu0 %v345
      %391 = vmatprep.subr.bf16.mxu0 0
      %392 = vmatpush1.bf16.msra.mxu0 %v346
      %393 = vmatprep.subr.bf16.mxu0 0
      %394 = vmatpush1.bf16.msra.mxu0 %v347
      %395 = vmatprep.subr.bf16.mxu0 0
      %396 = vmatpush1.bf16.msra.mxu0 %v348
      %397 = vmatprep.mubr.bf16.mxu0 %v254
      %398 = vmatmul.mubr.bf16.gmra.mrb[0].mxu0 %v253
      %v399 = vpop.f32.mrb[0].mxu0
      %v400 = vadd.f32 0.0, %v399
      %v401 = vpop.f32.mrb[0].mxu0
      %v402 = vpop.f32.mrb[0].mxu0
      %v403 = vadd.f32 0.0, %v402
      %v404 = vpop.f32.mrb[0].mxu0
      %405 = vmatprep.mubr.bf16.mxu0 %v256
      %406 = vmatmul.mubr.bf16.gmra.mrb[0].mxu0 %v255
      %v407 = vpop.f32.mrb[0].mxu0
      %v408 = vadd.f32 0.0, %v407
      %v409 = vpop.f32.mrb[0].mxu0
      %v410 = vpop.f32.mrb[0].mxu0
      %v411 = vadd.f32 0.0, %v410
      %v412 = vpop.f32.mrb[0].mxu0
      %413 = vmatprep.mubr.bf16.mxu0 %v258
      %414 = vmatmul.mubr.bf16.gmra.mrb[0].mxu0 %v257
      %v415 = vpop.f32.mrb[0].mxu0
      %v416 = vadd.f32 0.0, %v415
      %v417 = vpop.f32.mrb[0].mxu0
      %v418 = vpop.f32.mrb[0].mxu0
      %v419 = vadd.f32 0.0, %v418
      %v420 = vpop.f32.mrb[0].mxu0
      %421 = vmatprep.mubr.bf16.mxu0 %v260
      %422 = vmatmul.mubr.bf16.gmra.mrb[0].mxu0 %v259
      %v423 = vpop.f32.mrb[0].mxu0
      %v424 = vadd.f32 0.0, %v423
      %v425 = vpop.f32.mrb[0].mxu0
      %v426 = vpop.f32.mrb[0].mxu0
      %v427 = vadd.f32 0.0, %v426
      %v428 = vpop.f32.mrb[0].mxu0
      %429 = vdwg.mxu0
      %v430 = vpack.c.bf16 %v403, %v400
      %v431 = vpack.c.bf16 %v411, %v408
      %v432 = vpack.c.bf16 %v419, %v416
      %v433 = vpack.c.bf16 %v427, %v424
      %v438 = vunpack.c.l.b16 %v430
      %v439 = vunpack.c.h.b16 %v430
      %v440 = vunpack.c.l.b16 %v431
      %v441 = vunpack.c.h.b16 %v431
      %v442 = vunpack.c.l.b16 %v432
      %v443 = vunpack.c.h.b16 %v432
      %v444 = vunpack.c.l.b16 %v433
      %v445 = vunpack.c.h.b16 %v433
      %v446 = vpack.c.b16 %v438, %v438
      %v447 = vpack.c.b16 %v439, %v439
      %v448 = vpack.c.b16 %v440, %v440
      %v449 = vpack.c.b16 %v441, %v441
      %v450 = vpack.c.b16 %v442, %v442
      %v451 = vpack.c.b16 %v443, %v443
      %v452 = vpack.c.b16 %v444, %v444
      %v453 = vpack.c.b16 %v445, %v445
      %462 = vst [vmem:[%s182] sm:$0xf] %v446
      %463 = vst [vmem:[%s182 + $0x4] sm:$0xf] %v447
      %464 = vst [vmem:[%s182 + $0x8] sm:$0xf] %v448
      %465 = vst [vmem:[%s182 + $0xc] sm:$0xf] %v449
      %466 = vst [vmem:[%s182 + $0x10] sm:$0xf] %v450
      %467 = vst [vmem:[%s182 + $0x14] sm:$0xf] %v451
      %468 = vst [vmem:[%s182 + $0x18] sm:$0xf] %v452
      %469 = vst [vmem:[%s182 + $0x1c] sm:$0xf] %v453
      %v470 = vadd.f32 %v400, %v403
      %v471 = vadd.f32 %v470, %v408
      %v472 = vadd.f32 %v471, %v411
      %v473 = vadd.f32 %v472, %v416
      %v474 = vadd.f32 %v473, %v419
      %v475 = vadd.f32 %v474, %v424
      %v476 = vadd.f32 %v475, %v427
      %v477 = vrot.slane %v476, 4
      %v478 = vadd.f32 %v476, %v477
      %v479 = vrot.slane %v478, 2
      %v480 = vadd.f32 %v478, %v479
      %v481 = vrot.slane %v480, 1
      %v482 = vadd.f32 %v480, %v481
      %v483 = vmul.f32 %v400, %v400
      %v484 = vmul.f32 %v403, %v403
      %v485 = vmul.f32 %v408, %v408
      %v486 = vmul.f32 %v411, %v411
      %v487 = vmul.f32 %v416, %v416
      %v488 = vmul.f32 %v419, %v419
      %v489 = vmul.f32 %v424, %v424
      %v490 = vmul.f32 %v427, %v427
      %v491 = vadd.f32 %v483, %v484
      %v492 = vadd.f32 %v491, %v485
      %v493 = vadd.f32 %v492, %v486
      %v494 = vadd.f32 %v493, %v487
      %v495 = vadd.f32 %v494, %v488
      %v496 = vadd.f32 %v495, %v489
      %v497 = vadd.f32 %v496, %v490
      %v498 = vrot.slane %v497, 4
      %v499 = vadd.f32 %v497, %v498
      %v500 = vrot.slane %v499, 2
      %v501 = vadd.f32 %v499, %v500
      %v502 = vrot.slane %v501, 1
      %v503 = vadd.f32 %v501, %v502
      %vm504 = vcmask 1040384
      %v505 = vsel %vm504, %v482, %v503
      %506 = vst [vmem:[%s187] sm:$0x3] %v505
      %s507 = smul.u32 8, %s15
      %p508 = scmp.lt.s32.totalorder %s507, 63
      %s509 = scalar_select %p508, %s507, 63
      %s510 = smul.addr %s509, 4
      %s511 = scalar_lea.vmem %s2, %s510
      %p512 = scmp.lt.s32.totalorder %s15, 7
      %s513 = scalar_select %p512, %s15, 7
      %s514 = smul.addr %s513, 2
      %s515 = scalar_lea.vmem %s3, %s514
      // Predicated region
      $region29: #{inconv_forward.2} parent=27 // pred_check
        %p516 = pneg %p80
      $region30: #{inconv_forward.2} parent=27 // pred_check_branch
        %518 = sbr.rel (%p516) target = $region32
      $region31: #{inconv_forward.2} parent=27 // pred_region
        %s519 = smul.u32 8, %s15
      $region32: #{inconv_forward.2} parent=27 // pred_fallthru
        _
      // Predicated region
      $region33: #{inconv_forward.2} parent=27 // pred_check
        %p520 = pneg %p106
      $region34: #{inconv_forward.2} parent=27 // pred_check_branch
        %522 = sbr.rel (%p520) target = $region36
      $region35: #{inconv_forward.2} parent=27 // pred_region
        _
      $region36: #{inconv_forward.2} parent=27 // pred_fallthru
        _
    $region28: #{inconv_forward.2} parent=5 // pred_fallthru
      _
    %p523 = scmp.le.s32.totalorder 2, %s10
    // Predicated region
    $region37: #{inconv_forward.2} parent=5 // pred_check
      %p524 = pneg %p523
    $region38: #{inconv_forward.2} parent=5 // pred_check_branch
      %526 = sbr.rel (%p524) target = $region40
    $region39: #{inconv_forward.2} parent=5 // pred_region
      %s527 = ssub.s32 %s10, 2
      // Predicated region
      $region41: #{inconv_forward.2} parent=39 // pred_check
        %p528 = pneg %p86
      $region42: #{inconv_forward.2} parent=39 // pred_check_branch
        %530 = sbr.rel (%p528) target = $region44
      $region43: #{inconv_forward.2} parent=39 // pred_region
        %s531 = smul.u32 8, %s16
        %p532 = scmp.lt.s32.totalorder %s531, 63
        %s533 = scalar_select %p532, %s531, 63
        %s534 = smul.addr %s533, 4
        %s535 = scalar_lea.vmem %s2, %s534
      $region44: #{inconv_forward.2} parent=39 // pred_fallthru
        _
      // Predicated region
      $region45: #{inconv_forward.2} parent=39 // pred_check
        %p536 = pneg %p112
      $region46: #{inconv_forward.2} parent=39 // pred_check_branch
        %538 = sbr.rel (%p536) target = $region48
      $region47: #{inconv_forward.2} parent=39 // pred_region
        %p539 = scmp.lt.s32.totalorder %s16, 7
        %s540 = scalar_select %p539, %s16, 7
        %s541 = smul.addr %s540, 2
        %s542 = scalar_lea.vmem %s3, %s541
      $region48: #{inconv_forward.2} parent=39 // pred_fallthru
        _
    $region40: #{inconv_forward.2} parent=5 // pred_fallthru
      _
  $region6: #{inconv_forward.2} parent=0 // loop_footer
    %s14 = sadd.s32 1, %s10
  $region7: #{inconv_forward.2} parent=0 // loop_footer_branch
    %9 = sbr.rel target = $region3
  $region8: #{inconv_forward.2} parent=0 // loop_exit
    _

</llo_original>
